<compile_context>
chip_gen: v7x
topology: tpu7x:2x2x1
jax: 0.10.0
libtpu: 0.0.40
codegen_flags: <defaults>
</compile_context>

<pallas_src>
import functools
import math

import jax
import jax.numpy as jnp
from jax import lax
from jax.experimental import pallas as pl
from jax.experimental.pallas import tpu as pltpu


# ----------------------------- Kernel 1: QKV projection ---------------------


def _qkv_proj_kernel(x_ref, w_ref, q_ref, k_ref, v_ref, *,
                     num_heads, head_dim, q_scale):
    """One grid step = (batch b, row tile ti): project a (tm, D) slab of x."""
    x = x_ref[0]                                                   # (tm, D)
    # Single full-width matmul: N = 3*D fills the MXU; f32 accumulation.
    qkv = jnp.dot(x, w_ref[...], preferred_element_type=jnp.float32)  # (tm, 3D)
    d_model = num_heads * head_dim
    for h in range(num_heads):                                     # static unroll
        lo = h * head_dim
        q_ref[0, h] = (qkv[:, lo:lo + head_dim] * q_scale).astype(q_ref.dtype)
        k_ref[0, h] = qkv[:, d_model + lo:
                          d_model + lo + head_dim].astype(k_ref.dtype)
        v_ref[0, h] = qkv[:, 2 * d_model + lo:
                          2 * d_model + lo + head_dim].astype(v_ref.dtype)


# ----------------------------- Kernel 2: flash attention + out-proj ---------


def _flash_kernel(q_ref, k_ref, v_ref, wo_ref, o_ref,
                  m_s, l_s, acc_s, out_s, *, approx_recip):
    """One grid step = (batch b, query tile qi, head h, kv tile ki)."""
    h = pl.program_id(2)
    ki = pl.program_id(3)
    n_heads = pl.num_programs(2)
    n_kv = pl.num_programs(3)

    # Init the per-(b, qi) output-projection accumulator at the very first step.
    @pl.when(jnp.logical_and(h == 0, ki == 0))
    def _():
        out_s[...] = jnp.zeros_like(out_s)

    # Per-(b, qi, h) flash state reset.
    @pl.when(ki == 0)
    def _():
        m_s[...] = jnp.full_like(m_s, -jnp.inf)
        l_s[...] = jnp.zeros_like(l_s)
        acc_s[...] = jnp.zeros_like(acc_s)

    q = q_ref[0, 0]                      # (tq, hd), pre-scaled by log2(e)/sqrt(hd)
    k = k_ref[0, 0]                      # (tk, hd)
    v = v_ref[0, 0]                      # (tk, hd)

    # Scores already carry log2(e)*1/sqrt(hd); stats stay in f32.
    s = lax.dot_general(q, k, (((1,), (1,)), ((), ())),
                        preferred_element_type=jnp.float32)        # (tq, tk)
    m_prev = m_s[...]
    m_new = jnp.maximum(m_prev, jnp.max(s, axis=-1, keepdims=True))
    alpha = jnp.exp2(m_prev - m_new)                               # EUP pow2
    p = jnp.exp2(s - m_new)
    l_s[...] = alpha * l_s[...] + jnp.sum(p, axis=-1, keepdims=True)
    acc_s[...] = alpha * acc_s[...] + jnp.dot(
        p.astype(v.dtype), v, preferred_element_type=jnp.float32)
    m_s[...] = m_new

    # Last kv tile: normalize and fold in this head's slice of W_proj
    # (wo_ref is the full (nh, hd, D) VMEM-resident block, sliced by head).
    @pl.when(ki == n_kv - 1)
    def _():
        inv_l = pl.reciprocal(l_s[...], approx=approx_recip)
        y = (acc_s[...] * inv_l).astype(q.dtype)                   # (tq, hd)
        out_s[...] += jnp.dot(y, wo_ref[h],
                              preferred_element_type=jnp.float32)

    # Last head & last kv tile: emit the lane-dense (tq, D) output block.
    @pl.when(jnp.logical_and(h == n_heads - 1, ki == n_kv - 1))
    def _():
        o_ref[0] = out_s[...].astype(o_ref.dtype)


# ----------------------------- Wrapper ---------------------------------------


def _pick_tile(total, cap):
    """Largest multiple-of-8 tile <= cap dividing `total`; else full axis."""
    if total <= cap:
        return total
    for t in range(cap - cap % 8, 7, -8):
        if total % t == 0:
            return t
    # TODO(synk): for very large T with no multiple-of-8 divisor, pad T instead
    # of falling back to a full-length block.
    return total


def causal_self_attention(x, w_attn_t, w_proj_t, *, num_heads,
                          proj_block=256, q_block=256, kv_block=512):
    """x: (B, T, D); w_attn_t: (D, 3D); w_proj_t: (D, D). Returns (B, T, D).

    Weights are the transposed nn.Linear weights (in_features, out_features).
    """
    B, T, D = x.shape
    assert D % num_heads == 0
    hd = D // num_heads
    dtype = x.dtype
    # exp2 trick: fold log2(e) into the softmax scale applied to q.
    q_scale = math.log2(math.e) / math.sqrt(hd)
    # Exact reciprocal for f32 outputs; approx (~2^-12 rel err) only for bf16.
    approx_recip = bool(jnp.dtype(dtype) == jnp.dtype(jnp.bfloat16))

    # ---- Stage 1: QKV projection (head-major outputs, scale folded into q) --
    tm = _pick_tile(T, proj_block)
    proj_kernel = functools.partial(_qkv_proj_kernel, num_heads=num_heads,
                                    head_dim=hd, q_scale=q_scale)
    qkv_shape = jax.ShapeDtypeStruct((B, num_heads, T, hd), dtype)
    q, k, v = pl.pallas_call(
        proj_kernel,
        out_shape=(qkv_shape, qkv_shape, qkv_shape),
        grid_spec=pltpu.PrefetchScalarGridSpec(
            num_scalar_prefetch=0,
            grid=(B, T // tm),
            in_specs=[
                pl.BlockSpec((1, tm, D), lambda b, ti: (b, ti, 0)),
                # Full weight block, constant index -> VMEM-resident, one fetch.
                pl.BlockSpec((D, 3 * D), lambda b, ti: (0, 0)),
            ],
            out_specs=[
                pl.BlockSpec((1, num_heads, tm, hd), lambda b, ti: (b, 0, ti, 0)),
                pl.BlockSpec((1, num_heads, tm, hd), lambda b, ti: (b, 0, ti, 0)),
                pl.BlockSpec((1, num_heads, tm, hd), lambda b, ti: (b, 0, ti, 0)),
            ],
        ),
        compiler_params=pltpu.CompilerParams(
            dimension_semantics=("parallel", "parallel"),
            vmem_limit_bytes=32 * 1024 * 1024,
        ),
    )(x, w_attn_t)

    # ---- Stage 2: flash attention fused with the output projection ----------
    wo = w_proj_t.reshape(num_heads, hd, D)            # head-major W_proj
    tq = _pick_tile(T, q_block)
    tk = _pick_tile(T, kv_block)
    grid = (B, T // tq, num_heads, T // tk)

    flash_kernel = functools.partial(_flash_kernel, approx_recip=approx_recip)

    return pl.pallas_call(
        flash_kernel,
        out_shape=jax.ShapeDtypeStruct((B, T, D), dtype),
        grid_spec=pltpu.PrefetchScalarGridSpec(
            num_scalar_prefetch=0,
            grid=grid,
            in_specs=[
                # Pre-projected q tile (resident across the kv axis).
                pl.BlockSpec((1, 1, tq, hd), lambda b, qi, h, ki: (b, h, qi, 0)),
                # Pre-projected K / V tiles (streamed over the kv axis).
                pl.BlockSpec((1, 1, tk, hd), lambda b, qi, h, ki: (b, h, ki, 0)),
                pl.BlockSpec((1, 1, tk, hd), lambda b, qi, h, ki: (b, h, ki, 0)),
                # Output-projection weights: whole (nh, hd, D) block, constant
                # index -> VMEM-resident for the entire kernel (D^2 * 2 B; fine
                # up to D~2048 on v5e/v6e, D~1024 on v7x).
                pl.BlockSpec((num_heads, hd, D), lambda b, qi, h, ki: (0, 0, 0)),
            ],
            out_specs=pl.BlockSpec((1, tq, D), lambda b, qi, h, ki: (b, qi, 0)),
            scratch_shapes=[
                pltpu.VMEM((tq, 1), jnp.float32),    # running max  m
                pltpu.VMEM((tq, 1), jnp.float32),    # running sum  l
                pltpu.VMEM((tq, hd), jnp.float32),   # unnormalized attn accum
                pltpu.VMEM((tq, D), jnp.float32),    # output-projection accum
            ],
        ),
        compiler_params=pltpu.CompilerParams(
            dimension_semantics=("parallel", "parallel",
                                 "arbitrary", "arbitrary"),
            vmem_limit_bytes=32 * 1024 * 1024,
        ),
    )(q, k, v, wo)


# ----------------------------- Reference & test ------------------------------


def _reference(x, w_attn_t, w_proj_t, num_heads):
    """Pure-JAX reference matching the PyTorch forward (eval mode)."""
    B, T, D = x.shape
    hd = D // num_heads
    qkv = x @ w_attn_t                                            # (B, T, 3D)
    q, k, v = jnp.split(qkv, 3, axis=-1)

    def split_heads(t):
        return t.reshape(B, T, num_heads, hd).transpose(0, 2, 1, 3)

    q, k, v = split_heads(q), split_heads(k), split_heads(v)
    s = jnp.einsum("bhqd,bhkd->bhqk", q, k) / math.sqrt(hd)
    p = jax.nn.softmax(s, axis=-1)
    y = jnp.einsum("bhqk,bhkd->bhqd", p, v)
    y = y.transpose(0, 2, 1, 3).reshape(B, T, D)
    return y @ w_proj_t


if __name__ == "__main__":
    # Small shapes consistent with the module.
    B, T = 2, 8
    d_model, num_heads = 32, 4

    key = jax.random.PRNGKey(0)
    kx, ka, kp = jax.random.split(key, 3)

    x32 = jax.random.normal(kx, (B, T, d_model), dtype=jnp.float32)

    # nn.Linear weights are (out, in); store them transposed (in, out).
    bound = 1.0 / math.sqrt(d_model)
    w_attn = jax.random.uniform(ka, (3 * d_model, d_model),
                                minval=-bound, maxval=bound, dtype=jnp.float32)
    w_proj = jax.random.uniform(kp, (d_model, d_model),
                                minval=-bound, maxval=bound, dtype=jnp.float32)
    w_attn_t32 = w_attn.T    # (D, 3D)
    w_proj_t32 = w_proj.T    # (D, D)

    ref32 = _reference(x32, w_attn_t32, w_proj_t32, num_heads)

    # f32 path (exact reciprocal in the softmax normalization).
    out_f32 = causal_self_attention(x32, w_attn_t32, w_proj_t32,
                                    num_heads=num_heads)
    out_f32 = jax.block_until_ready(out_f32)
    assert out_f32.shape == (B, T, d_model)
    assert jnp.allclose(out_f32, ref32, atol=1e-2, rtol=1e-2), "f32 mismatch"

    # bf16 path: native-dtype MXU inputs with f32 accumulation (the fast path).
    out_bf16 = causal_self_attention(x32.astype(jnp.bfloat16),
                                     w_attn_t32.astype(jnp.bfloat16),
                                     w_proj_t32.astype(jnp.bfloat16),
                                     num_heads=num_heads)
    out_bf16 = jax.block_until_ready(out_bf16)
    assert out_bf16.dtype == jnp.bfloat16
    assert jnp.allclose(out_bf16.astype(jnp.float32), ref32,
                        atol=5e-2, rtol=5e-2), "bf16 mismatch"

    print("KERNEL_OK")
</pallas_src>

<mosaic_0001>
module attributes {stable_mosaic.version = 11 : i64} {
  func.func @_qkv_proj_kernel(%arg0: i32, %arg1: i32, %arg2: memref<1x8x32xf32, #tpu.memory_space<vmem>>, %arg3: memref<32x96xf32, #tpu.memory_space<vmem>>, %arg4: memref<1x4x8x8xf32, #tpu.memory_space<vmem>>, %arg5: memref<1x4x8x8xf32, #tpu.memory_space<vmem>>, %arg6: memref<1x4x8x8xf32, #tpu.memory_space<vmem>>) attributes {dimension_semantics = [#tpu.dimension_semantics<parallel>, #tpu.dimension_semantics<parallel>], iteration_bounds = array<i64: 2, 1>, scalar_prefetch = 0 : i64, scratch_operands = 0 : i64, tpu.core_type = #tpu.core_type<tc>, window_params = [{transform_indices = @transform_0, window_bounds = array<i64: 1, 8, 32>}, {pipeline_mode = #tpu.pipeline_mode<synchronous>, transform_indices = @transform_1, window_bounds = array<i64: 32, 96>}, {transform_indices = @transform_2, window_bounds = array<i64: 1, 4, 8, 8>}, {transform_indices = @transform_3, window_bounds = array<i64: 1, 4, 8, 8>}, {transform_indices = @transform_4, window_bounds = array<i64: 1, 4, 8, 8>}]} {
    %c0 = arith.constant 0 : index
    %c0_0 = arith.constant 0 : index
    %c0_1 = arith.constant 0 : index
    %0 = vector.load %arg2[%c0, %c0_0, %c0_1] : memref<1x8x32xf32, #tpu.memory_space<vmem>>, vector<1x8x32xf32>
    %1 = vector.shape_cast %0 : vector<1x8x32xf32> to vector<8x32xf32>
    %c0_2 = arith.constant 0 : index
    %c0_3 = arith.constant 0 : index
    %2 = vector.load %arg3[%c0_2, %c0_3] : memref<32x96xf32, #tpu.memory_space<vmem>>, vector<32x96xf32>
    %cst = arith.constant dense<0.000000e+00> : vector<8x96xf32>
    %3 = tpu.matmul %1, %2, %cst {dimension_numbers = #tpu.dot_dimension_numbers<[1], [0], [0], [1], [0, 0, 1, 1], [], []>} : vector<8x32xf32>, vector<32x96xf32>, vector<8x96xf32> -> vector<8x96xf32>
    %4 = vector.extract_strided_slice %3 {offsets = [0, 0], sizes = [8, 8], strides = [1, 1]} : vector<8x96xf32> to vector<8x8xf32>
    %cst_4 = arith.constant 0.510069728 : f32
    %5 = vector.broadcast %cst_4 : f32 to vector<8x8xf32>
    %6 = arith.mulf %4, %5 : vector<8x8xf32>
    %c0_5 = arith.constant 0 : index
    %c0_6 = arith.constant 0 : index
    %c0_7 = arith.constant 0 : index
    %c0_8 = arith.constant 0 : index
    %7 = vector.load %arg4[%c0_5, %c0_6, %c0_7, %c0_8] : memref<1x4x8x8xf32, #tpu.memory_space<vmem>>, vector<1x1x8x8xf32>
    %8 = vector.shape_cast %7 : vector<1x1x8x8xf32> to vector<8x8xf32>
    %9 = vector.shape_cast %6 : vector<8x8xf32> to vector<1x1x8x8xf32>
    tpu.vector_store %arg4[%c0_5, %c0_6, %c0_7, %c0_8], %9 {strides = array<i32>} : memref<1x4x8x8xf32, #tpu.memory_space<vmem>>, vector<1x1x8x8xf32>,
    %10 = vector.extract_strided_slice %3 {offsets = [0, 32], sizes = [8, 8], strides = [1, 1]} : vector<8x96xf32> to vector<8x8xf32>
    %c0_9 = arith.constant 0 : index
    %c0_10 = arith.constant 0 : index
    %c0_11 = arith.constant 0 : index
    %c0_12 = arith.constant 0 : index
    %11 = vector.load %arg5[%c0_9, %c0_10, %c0_11, %c0_12] : memref<1x4x8x8xf32, #tpu.memory_space<vmem>>, vector<1x1x8x8xf32>
    %12 = vector.shape_cast %11 : vector<1x1x8x8xf32> to vector<8x8xf32>
    %13 = vector.shape_cast %10 : vector<8x8xf32> to vector<1x1x8x8xf32>
    tpu.vector_store %arg5[%c0_9, %c0_10, %c0_11, %c0_12], %13 {strides = array<i32>} : memref<1x4x8x8xf32, #tpu.memory_space<vmem>>, vector<1x1x8x8xf32>,
    %14 = vector.extract_strided_slice %3 {offsets = [0, 64], sizes = [8, 8], strides = [1, 1]} : vector<8x96xf32> to vector<8x8xf32>
    %c0_13 = arith.constant 0 : index
    %c0_14 = arith.constant 0 : index
    %c0_15 = arith.constant 0 : index
    %c0_16 = arith.constant 0 : index
    %15 = vector.load %arg6[%c0_13, %c0_14, %c0_15, %c0_16] : memref<1x4x8x8xf32, #tpu.memory_space<vmem>>, vector<1x1x8x8xf32>
    %16 = vector.shape_cast %15 : vector<1x1x8x8xf32> to vector<8x8xf32>
    %17 = vector.shape_cast %14 : vector<8x8xf32> to vector<1x1x8x8xf32>
    tpu.vector_store %arg6[%c0_13, %c0_14, %c0_15, %c0_16], %17 {strides = array<i32>} : memref<1x4x8x8xf32, #tpu.memory_space<vmem>>, vector<1x1x8x8xf32>,
    %18 = vector.extract_strided_slice %3 {offsets = [0, 8], sizes = [8, 8], strides = [1, 1]} : vector<8x96xf32> to vector<8x8xf32>
    %cst_17 = arith.constant 0.510069728 : f32
    %19 = vector.broadcast %cst_17 : f32 to vector<8x8xf32>
    %20 = arith.mulf %18, %19 : vector<8x8xf32>
    %c0_18 = arith.constant 0 : index
    %c1 = arith.constant 1 : index
    %c0_19 = arith.constant 0 : index
    %c0_20 = arith.constant 0 : index
    %21 = vector.load %arg4[%c0_18, %c1, %c0_19, %c0_20] : memref<1x4x8x8xf32, #tpu.memory_space<vmem>>, vector<1x1x8x8xf32>
    %22 = vector.shape_cast %21 : vector<1x1x8x8xf32> to vector<8x8xf32>
    %23 = vector.shape_cast %20 : vector<8x8xf32> to vector<1x1x8x8xf32>
    tpu.vector_store %arg4[%c0_18, %c1, %c0_19, %c0_20], %23 {strides = array<i32>} : memref<1x4x8x8xf32, #tpu.memory_space<vmem>>, vector<1x1x8x8xf32>,
    %24 = vector.extract_strided_slice %3 {offsets = [0, 40], sizes = [8, 8], strides = [1, 1]} : vector<8x96xf32> to vector<8x8xf32>
    %c0_21 = arith.constant 0 : index
    %c1_22 = arith.constant 1 : index
    %c0_23 = arith.constant 0 : index
    %c0_24 = arith.constant 0 : index
    %25 = vector.load %arg5[%c0_21, %c1_22, %c0_23, %c0_24] : memref<1x4x8x8xf32, #tpu.memory_space<vmem>>, vector<1x1x8x8xf32>
    %26 = vector.shape_cast %25 : vector<1x1x8x8xf32> to vector<8x8xf32>
    %27 = vector.shape_cast %24 : vector<8x8xf32> to vector<1x1x8x8xf32>
    tpu.vector_store %arg5[%c0_21, %c1_22, %c0_23, %c0_24], %27 {strides = array<i32>} : memref<1x4x8x8xf32, #tpu.memory_space<vmem>>, vector<1x1x8x8xf32>,
    %28 = vector.extract_strided_slice %3 {offsets = [0, 72], sizes = [8, 8], strides = [1, 1]} : vector<8x96xf32> to vector<8x8xf32>
    %c0_25 = arith.constant 0 : index
    %c1_26 = arith.constant 1 : index
    %c0_27 = arith.constant 0 : index
    %c0_28 = arith.constant 0 : index
    %29 = vector.load %arg6[%c0_25, %c1_26, %c0_27, %c0_28] : memref<1x4x8x8xf32, #tpu.memory_space<vmem>>, vector<1x1x8x8xf32>
    %30 = vector.shape_cast %29 : vector<1x1x8x8xf32> to vector<8x8xf32>
    %31 = vector.shape_cast %28 : vector<8x8xf32> to vector<1x1x8x8xf32>
    tpu.vector_store %arg6[%c0_25, %c1_26, %c0_27, %c0_28], %31 {strides = array<i32>} : memref<1x4x8x8xf32, #tpu.memory_space<vmem>>, vector<1x1x8x8xf32>,
    %32 = vector.extract_strided_slice %3 {offsets = [0, 16], sizes = [8, 8], strides = [1, 1]} : vector<8x96xf32> to vector<8x8xf32>
    %cst_29 = arith.constant 0.510069728 : f32
    %33 = vector.broadcast %cst_29 : f32 to vector<8x8xf32>
    %34 = arith.mulf %32, %33 : vector<8x8xf32>
    %c0_30 = arith.constant 0 : index
    %c2 = arith.constant 2 : index
    %c0_31 = arith.constant 0 : index
    %c0_32 = arith.constant 0 : index
    %35 = vector.load %arg4[%c0_30, %c2, %c0_31, %c0_32] : memref<1x4x8x8xf32, #tpu.memory_space<vmem>>, vector<1x1x8x8xf32>
    %36 = vector.shape_cast %35 : vector<1x1x8x8xf32> to vector<8x8xf32>
    %37 = vector.shape_cast %34 : vector<8x8xf32> to vector<1x1x8x8xf32>
    tpu.vector_store %arg4[%c0_30, %c2, %c0_31, %c0_32], %37 {strides = array<i32>} : memref<1x4x8x8xf32, #tpu.memory_space<vmem>>, vector<1x1x8x8xf32>,
    %38 = vector.extract_strided_slice %3 {offsets = [0, 48], sizes = [8, 8], strides = [1, 1]} : vector<8x96xf32> to vector<8x8xf32>
    %c0_33 = arith.constant 0 : index
    %c2_34 = arith.constant 2 : index
    %c0_35 = arith.constant 0 : index
    %c0_36 = arith.constant 0 : index
    %39 = vector.load %arg5[%c0_33, %c2_34, %c0_35, %c0_36] : memref<1x4x8x8xf32, #tpu.memory_space<vmem>>, vector<1x1x8x8xf32>
    %40 = vector.shape_cast %39 : vector<1x1x8x8xf32> to vector<8x8xf32>
    %41 = vector.shape_cast %38 : vector<8x8xf32> to vector<1x1x8x8xf32>
    tpu.vector_store %arg5[%c0_33, %c2_34, %c0_35, %c0_36], %41 {strides = array<i32>} : memref<1x4x8x8xf32, #tpu.memory_space<vmem>>, vector<1x1x8x8xf32>,
    %42 = vector.extract_strided_slice %3 {offsets = [0, 80], sizes = [8, 8], strides = [1, 1]} : vector<8x96xf32> to vector<8x8xf32>
    %c0_37 = arith.constant 0 : index
    %c2_38 = arith.constant 2 : index
    %c0_39 = arith.constant 0 : index
    %c0_40 = arith.constant 0 : index
    %43 = vector.load %arg6[%c0_37, %c2_38, %c0_39, %c0_40] : memref<1x4x8x8xf32, #tpu.memory_space<vmem>>, vector<1x1x8x8xf32>
    %44 = vector.shape_cast %43 : vector<1x1x8x8xf32> to vector<8x8xf32>
    %45 = vector.shape_cast %42 : vector<8x8xf32> to vector<1x1x8x8xf32>
    tpu.vector_store %arg6[%c0_37, %c2_38, %c0_39, %c0_40], %45 {strides = array<i32>} : memref<1x4x8x8xf32, #tpu.memory_space<vmem>>, vector<1x1x8x8xf32>,
    %46 = vector.extract_strided_slice %3 {offsets = [0, 24], sizes = [8, 8], strides = [1, 1]} : vector<8x96xf32> to vector<8x8xf32>
    %cst_41 = arith.constant 0.510069728 : f32
    %47 = vector.broadcast %cst_41 : f32 to vector<8x8xf32>
    %48 = arith.mulf %46, %47 : vector<8x8xf32>
    %c0_42 = arith.constant 0 : index
    %c3 = arith.constant 3 : index
    %c0_43 = arith.constant 0 : index
    %c0_44 = arith.constant 0 : index
    %49 = vector.load %arg4[%c0_42, %c3, %c0_43, %c0_44] : memref<1x4x8x8xf32, #tpu.memory_space<vmem>>, vector<1x1x8x8xf32>
    %50 = vector.shape_cast %49 : vector<1x1x8x8xf32> to vector<8x8xf32>
    %51 = vector.shape_cast %48 : vector<8x8xf32> to vector<1x1x8x8xf32>
    tpu.vector_store %arg4[%c0_42, %c3, %c0_43, %c0_44], %51 {strides = array<i32>} : memref<1x4x8x8xf32, #tpu.memory_space<vmem>>, vector<1x1x8x8xf32>,
    %52 = vector.extract_strided_slice %3 {offsets = [0, 56], sizes = [8, 8], strides = [1, 1]} : vector<8x96xf32> to vector<8x8xf32>
    %c0_45 = arith.constant 0 : index
    %c3_46 = arith.constant 3 : index
    %c0_47 = arith.constant 0 : index
    %c0_48 = arith.constant 0 : index
    %53 = vector.load %arg5[%c0_45, %c3_46, %c0_47, %c0_48] : memref<1x4x8x8xf32, #tpu.memory_space<vmem>>, vector<1x1x8x8xf32>
    %54 = vector.shape_cast %53 : vector<1x1x8x8xf32> to vector<8x8xf32>
    %55 = vector.shape_cast %52 : vector<8x8xf32> to vector<1x1x8x8xf32>
    tpu.vector_store %arg5[%c0_45, %c3_46, %c0_47, %c0_48], %55 {strides = array<i32>} : memref<1x4x8x8xf32, #tpu.memory_space<vmem>>, vector<1x1x8x8xf32>,
    %56 = vector.extract_strided_slice %3 {offsets = [0, 88], sizes = [8, 8], strides = [1, 1]} : vector<8x96xf32> to vector<8x8xf32>
    %c0_49 = arith.constant 0 : index
    %c3_50 = arith.constant 3 : index
    %c0_51 = arith.constant 0 : index
    %c0_52 = arith.constant 0 : index
    %57 = vector.load %arg6[%c0_49, %c3_50, %c0_51, %c0_52] : memref<1x4x8x8xf32, #tpu.memory_space<vmem>>, vector<1x1x8x8xf32>
    %58 = vector.shape_cast %57 : vector<1x1x8x8xf32> to vector<8x8xf32>
    %59 = vector.shape_cast %56 : vector<8x8xf32> to vector<1x1x8x8xf32>
    tpu.vector_store %arg6[%c0_49, %c3_50, %c0_51, %c0_52], %59 {strides = array<i32>} : memref<1x4x8x8xf32, #tpu.memory_space<vmem>>, vector<1x1x8x8xf32>,
    return
  }
  func.func @transform_0(%arg0: i32, %arg1: i32) -> (i32, i32, i32) {
    %c0_i32 = arith.constant 0 : i32
    %c0_i32_0 = arith.constant 0 : i32
    return %arg0, %arg1, %c0_i32 : i32, i32, i32
  }
  func.func @transform_1(%arg0: i32, %arg1: i32) -> (i32, i32) {
    %c0_i32 = arith.constant 0 : i32
    %c0_i32_0 = arith.constant 0 : i32
    %c0_i32_1 = arith.constant 0 : i32
    return %c0_i32, %c0_i32_0 : i32, i32
  }
  func.func @transform_2(%arg0: i32, %arg1: i32) -> (i32, i32, i32, i32) {
    %c0_i32 = arith.constant 0 : i32
    %c0_i32_0 = arith.constant 0 : i32
    %c0_i32_1 = arith.constant 0 : i32
    return %arg0, %c0_i32, %arg1, %c0_i32_0 : i32, i32, i32, i32
  }
  func.func @transform_3(%arg0: i32, %arg1: i32) -> (i32, i32, i32, i32) {
    %c0_i32 = arith.constant 0 : i32
    %c0_i32_0 = arith.constant 0 : i32
    %c0_i32_1 = arith.constant 0 : i32
    return %arg0, %c0_i32, %arg1, %c0_i32_0 : i32, i32, i32, i32
  }
  func.func @transform_4(%arg0: i32, %arg1: i32) -> (i32, i32, i32, i32) {
    %c0_i32 = arith.constant 0 : i32
    %c0_i32_0 = arith.constant 0 : i32
    %c0_i32_1 = arith.constant 0 : i32
    return %arg0, %c0_i32, %arg1, %c0_i32_0 : i32, i32, i32, i32
  }
}

</mosaic_0001>

<llo_original>
// kernel: tpu_custom_call.1
$region0: #{tpu_custom_call.1}
  #allocation0 [shape = 'u32[]', space=smem, size = 0x4, offset = 0x4, fixed_abs, tag = 'smem constant byte address 0x4 - core index']
  #allocation1 [shape = 'u32[144,128]{1,0:T(1,128)}', space=vmem, size = 0x12000, scoped, tag = 'internal scratch']
  %s0 = inlined_call_operand.hbm [shape: f32[2,8,32], index: 0, kind: input, shape index: {}]
  %s1 = inlined_call_operand.hbm [shape: f32[32,96], index: 1, kind: input, shape index: {}]
  %s2 = inlined_call_operand.hbm [shape: f32[2,4,8,8], index: 2, kind: output, shape index: {0}]
  %s3 = inlined_call_operand.hbm [shape: f32[2,4,8,8], index: 3, kind: output, shape index: {1}]
  %s4 = inlined_call_operand.hbm [shape: f32[2,4,8,8], index: 4, kind: output, shape index: {2}]
  %5 = xla_tuple %s2, %s3, %s4
  %s6 = sld [smem:[#allocation0]]
  $region65: #{tpu_custom_call.1} parent=0
    _
  %s8 = ssub.s32 1, %s6
  %s9 = scalar_select 0, %s8, %s6
  $region1: #{tpu_custom_call.1} parent=0
    #allocation2 [shape = 'u8[8192]{0}', space=vmem, size = 0x2000, scoped, tag = 'input window, operand 0']
    #allocation3 [shape = 's32[2]{0}', space=sflag, size = 0x8, scoped, tag = 'scoped memory for tpu_custom_call.1']
    #allocation4 [shape = 's32[2]{0}', space=sflag, size = 0x8, scoped, tag = 'scoped memory for tpu_custom_call.1']
    #allocation5 [shape = 'u8[16384]{0}', space=vmem, size = 0x4000, scoped, tag = 'input window, operand 1, single buffered']
    #allocation6 [shape = 's32[1]{0}', space=sflag, size = 0x4, scoped, tag = 'scoped memory for tpu_custom_call.1']
    #allocation7 [shape = 'u8[32768]{0}', space=vmem, size = 0x8000, scoped, tag = 'output window, operand 0']
    #allocation8 [shape = 'u8[32768]{0}', space=vmem, size = 0x8000, scoped, tag = 'output window, operand 1']
    #allocation9 [shape = 's32[2]{0}', space=sflag, size = 0x8, scoped, tag = 'scoped memory for tpu_custom_call.1']
    #allocation10 [shape = 'u8[32768]{0}', space=vmem, size = 0x8000, scoped, tag = 'output window, operand 2']
    %10 = vsyncpa [#allocation3], 0
    %s11 = scalar_lea.sflag [#allocation3], 1
    %12 = vsyncpa %s11, 0
    %13 = vsyncpa [#allocation6], 0
    %14 = vsyncpa [#allocation4], 0
    %s15 = scalar_lea.sflag [#allocation4], 1
    %16 = vsyncpa %s15, 0
    %17 = vsyncpa [#allocation9], 0
    %s18 = scalar_lea.sflag [#allocation9], 1
    %19 = vsyncpa %s18, 0
    loop: start=0, step=1, limit=4
    $region2: #{tpu_custom_call.1} parent=1 // loop_pre_header
      _
    $region3: #{tpu_custom_call.1} parent=1 // loop_header
      %s21 = sphi 0, %s25
      %p22 = scmp.ge.s32.totalorder %s21, 4
      %s28 = sphi 0, %s40
      %s29 = sphi 0, %s36
      %s30 = sphi 0, %s28
      %s31 = sphi 0, %s29
      %s32 = sphi 0, %s30
      %s33 = sphi 0, %s31
      %s45 = sphi 0, %s47
      %s48 = sphi 0, %s45
      %s49 = sphi 0, %s48
      %s65 = sphi 0, %s49
      %s69 = sphi 0, %s69
      %s71 = sphi 0, %s69
      %s72 = sphi 0, %s71
      %s86 = sphi 0, %s72
      %s94 = sphi 0, %s96
      %s97 = sphi 0, %s94
      %s98 = sphi 0, %s97
      %s114 = sphi 0, %s98
      %s122 = sphi 0, %s124
      %s125 = sphi 0, %s122
      %s126 = sphi 0, %s125
      %s142 = sphi 0, %s126
      %s150 = sphi 0, %s152
      %s153 = sphi 0, %s150
      %s154 = sphi 0, %s153
      %s170 = sphi 0, %s154
    $region4: #{tpu_custom_call.1} parent=1 // loop_header_branch
      %24 = sbr.rel (%p22) target = $region8
    $region5: #{tpu_custom_call.1} parent=1 // loop_body
      %s26 = ssub.s32 %s21, 1
      %s27 = ssub.s32 %s21, 2
      %s34 = sadd.s32 1, %s29
      %p35 = scmp.ge.s32.totalorder %s34, 1
      %s36 = scalar_select %p35, 0, %s34
      %s37 = sadd.s32 1, %s28
      %s38 = scalar_select %p35, %s37, %s28
      %p39 = scmp.ge.s32.totalorder %s38, 2
      %s40 = scalar_select %p39, 0, %s38
      %s41 = ssub.s32 %s28, %s40
      %s42 = ssub.s32 %s29, %s36
      %s43 = sor.u32 %s41, %s42
      %p44 = scmp.eq.s32.totalorder %s43, 0
      %s46 = sadd.s32 %s45, 1
      %s47 = scalar_select %p44, %s45, %s46
      %p50 = pneg %p44
      %p51 = scmp.eq.s32.totalorder %s21, 1
      %p52 = por %p50, %p51
      %p53 = scmp.ne.s32.totalorder %s45, %s48
      %p54 = scmp.eq.s32.totalorder %s21, 0
      %p55 = por %p53, %p54
      %p56 = scmp.ne.s32.totalorder %s45, %s48
      %p57 = scmp.eq.s32.totalorder %s26, 1
      %p58 = por %p56, %p57
      %p59 = scmp.ne.s32.totalorder %s48, %s49
      %p60 = scmp.eq.s32.totalorder %s26, 0
      %p61 = por %p59, %p60
      %p62 = scmp.ne.s32.totalorder %s48, %s49
      %p63 = scmp.eq.s32.totalorder %s27, 1
      %p64 = por %p62, %p63
      %p66 = scmp.ne.s32.totalorder %s49, %s65
      %p67 = scmp.eq.s32.totalorder %s27, 0
      %p68 = por %p66, %p67
      %s70 = sadd.s32 %s69, 1
      %p73 = scmp.eq.s32.totalorder %s21, 1
      %p74 = scmp.ne.s32.totalorder %s69, %s71
      %p75 = scmp.eq.s32.totalorder %s21, 0
      %p76 = por %p74, %p75
      %p77 = scmp.ne.s32.totalorder %s69, %s71
      %p78 = scmp.eq.s32.totalorder %s26, 1
      %p79 = por %p77, %p78
      %p80 = scmp.ne.s32.totalorder %s71, %s72
      %p81 = scmp.eq.s32.totalorder %s26, 0
      %p82 = por %p80, %p81
      %p83 = scmp.ne.s32.totalorder %s71, %s72
      %p84 = scmp.eq.s32.totalorder %s27, 1
      %p85 = por %p83, %p84
      %p87 = scmp.ne.s32.totalorder %s72, %s86
      %p88 = scmp.eq.s32.totalorder %s27, 0
      %p89 = por %p87, %p88
      %s90 = ssub.s32 %s28, %s40
      %s91 = ssub.s32 %s29, %s36
      %s92 = sor.u32 %s90, %s91
      %p93 = scmp.eq.s32.totalorder %s92, 0
      %s95 = sadd.s32 %s94, 1
      %s96 = scalar_select %p93, %s94, %s95
      %p99 = pneg %p93
      %p100 = scmp.eq.s32.totalorder %s21, 1
      %p101 = por %p99, %p100
      %p102 = scmp.ne.s32.totalorder %s94, %s97
      %p103 = scmp.eq.s32.totalorder %s21, 0
      %p104 = por %p102, %p103
      %p105 = scmp.ne.s32.totalorder %s94, %s97
      %p106 = scmp.eq.s32.totalorder %s26, 1
      %p107 = por %p105, %p106
      %p108 = scmp.ne.s32.totalorder %s97, %s98
      %p109 = scmp.eq.s32.totalorder %s26, 0
      %p110 = por %p108, %p109
      %p111 = scmp.ne.s32.totalorder %s97, %s98
      %p112 = scmp.eq.s32.totalorder %s27, 1
      %p113 = por %p111, %p112
      %p115 = scmp.ne.s32.totalorder %s98, %s114
      %p116 = scmp.eq.s32.totalorder %s27, 0
      %p117 = por %p115, %p116
      %s118 = ssub.s32 %s28, %s40
      %s119 = ssub.s32 %s29, %s36
      %s120 = sor.u32 %s118, %s119
      %p121 = scmp.eq.s32.totalorder %s120, 0
      %s123 = sadd.s32 %s122, 1
      %s124 = scalar_select %p121, %s122, %s123
      %p127 = pneg %p121
      %p128 = scmp.eq.s32.totalorder %s21, 1
      %p129 = por %p127, %p128
      %p130 = scmp.ne.s32.totalorder %s122, %s125
      %p131 = scmp.eq.s32.totalorder %s21, 0
      %p132 = por %p130, %p131
      %p133 = scmp.ne.s32.totalorder %s122, %s125
      %p134 = scmp.eq.s32.totalorder %s26, 1
      %p135 = por %p133, %p134
      %p136 = scmp.ne.s32.totalorder %s125, %s126
      %p137 = scmp.eq.s32.totalorder %s26, 0
      %p138 = por %p136, %p137
      %p139 = scmp.ne.s32.totalorder %s125, %s126
      %p140 = scmp.eq.s32.totalorder %s27, 1
      %p141 = por %p139, %p140
      %p143 = scmp.ne.s32.totalorder %s126, %s142
      %p144 = scmp.eq.s32.totalorder %s27, 0
      %p145 = por %p143, %p144
      %s146 = ssub.s32 %s28, %s40
      %s147 = ssub.s32 %s29, %s36
      %s148 = sor.u32 %s146, %s147
      %p149 = scmp.eq.s32.totalorder %s148, 0
      %s151 = sadd.s32 %s150, 1
      %s152 = scalar_select %p149, %s150, %s151
      %p155 = pneg %p149
      %p156 = scmp.eq.s32.totalorder %s21, 1
      %p157 = por %p155, %p156
      %p158 = scmp.ne.s32.totalorder %s150, %s153
      %p159 = scmp.eq.s32.totalorder %s21, 0
      %p160 = por %p158, %p159
      %p161 = scmp.ne.s32.totalorder %s150, %s153
      %p162 = scmp.eq.s32.totalorder %s26, 1
      %p163 = por %p161, %p162
      %p164 = scmp.ne.s32.totalorder %s153, %s154
      %p165 = scmp.eq.s32.totalorder %s26, 0
      %p166 = por %p164, %p165
      %p167 = scmp.ne.s32.totalorder %s153, %s154
      %p168 = scmp.eq.s32.totalorder %s27, 1
      %p169 = por %p167, %p168
      %p171 = scmp.ne.s32.totalorder %s154, %s170
      %p172 = scmp.eq.s32.totalorder %s27, 0
      %p173 = por %p171, %p172
      %p174 = scmp.le.s32.totalorder 1, %s21
      %p175 = scmp.lt.s32.totalorder %s21, 3
      %p176 = pnand %p174, %p175
      %p177 = pneg %p176
      // Predicated region
      $region9: #{tpu_custom_call.1} parent=5 // pred_check
        _
      $region10: #{tpu_custom_call.1} parent=5 // pred_check_branch
        %179 = sbr.rel (%p176) target = $region12
      $region11: #{tpu_custom_call.1} parent=5 // pred_region
        %s180 = ssub.s32 %s21, 1
        // Predicated region
        $region13: #{tpu_custom_call.1} parent=11 // pred_check
          %p181 = pneg %p82
        $region14: #{tpu_custom_call.1} parent=11 // pred_check_branch
          %183 = sbr.rel (%p181) target = $region16
        $region15: #{tpu_custom_call.1} parent=11 // pred_region
          %s185 = ssub.s32 512, 512
          %186 = vsyncadd [#allocation6], %s185
          %s187 = sshll.u32 [#allocation5], 4
          %s188 = int_to_ptr.vmem [resolvable:$true] %s187
          %193 = dma.hbm_to_vmem [thread:$0]  %s1, 512, %s188, [#allocation6], 128, 128, 8
        $region16: #{tpu_custom_call.1} parent=11 // pred_fallthru
          _
      $region12: #{tpu_custom_call.1} parent=5 // pred_fallthru
        _
      %p194 = scmp.lt.s32.totalorder %s21, 2
      // Predicated region
      $region17: #{tpu_custom_call.1} parent=5 // pred_check
        %p195 = pneg %p194
      $region18: #{tpu_custom_call.1} parent=5 // pred_check_branch
        %197 = sbr.rel (%p195) target = $region20
      $region19: #{tpu_custom_call.1} parent=5 // pred_region
        // Predicated region
        $region21: #{tpu_custom_call.1} parent=19 // pred_check
          %p198 = pneg %p55
        $region22: #{tpu_custom_call.1} parent=19 // pred_check_branch
          %200 = sbr.rel (%p198) target = $region24
        $region23: #{tpu_custom_call.1} parent=19 // pred_region
          %s201 = sand.u32 %s45, 1
          %s202 = scalar_lea.sflag [#allocation3], %s201
          %s203 = sand.u32 %s45, 1
          %s204 = smul.addr %s203, 8
          %s205 = scalar_lea.vmem [#allocation2], %s204
          %s207 = ssub.s32 128, 128
          %208 = vsyncadd %s202, %s207
          %s209 = sadd.s32 %s29, %s28
          %s210 = smul.addr %s209, 128
          %s211 = scalar_lea.hbm %s0, %s210
          %s213 = sshll.u32 %s205, 4
          %s214 = int_to_ptr.vmem [resolvable:$true] %s213
          %216 = dma.hbm_to_vmem [thread:$0]  %s211, 128, %s214, %s202
        $region24: #{tpu_custom_call.1} parent=19 // pred_fallthru
          _
      $region20: #{tpu_custom_call.1} parent=5 // pred_fallthru
        _
      %p217 = scmp.le.s32.totalorder 1, %s21
      %p218 = scmp.lt.s32.totalorder %s21, 3
      %p219 = pnand %p217, %p218
      %p220 = pneg %p219
      // Predicated region
      $region25: #{tpu_custom_call.1} parent=5 // pred_check
        _
      $region26: #{tpu_custom_call.1} parent=5 // pred_check_branch
        %222 = sbr.rel (%p219) target = $region28
      $region27: #{tpu_custom_call.1} parent=5 // pred_region
        %s223 = ssub.s32 %s21, 1
        %s224 = sand.u32 %s48, 1
        %s225 = scalar_lea.sflag [#allocation3], %s224
        %s226 = sand.u32 %s48, 1
        %s227 = smul.addr %s226, 8
        %s228 = scalar_lea.vmem [#allocation2], %s227
        // Predicated region
        $region29: #{tpu_custom_call.1} parent=27 // pred_check
          %p229 = pneg %p61
        $region30: #{tpu_custom_call.1} parent=27 // pred_check_branch
          %231 = sbr.rel (%p229) target = $region32
        $region31: #{tpu_custom_call.1} parent=27 // pred_region
          %232 = dma.done %s225, 128
        $region32: #{tpu_custom_call.1} parent=27 // pred_fallthru
          _
        // Predicated region
        $region33: #{tpu_custom_call.1} parent=27 // pred_check
          %p233 = pneg %p82
        $region34: #{tpu_custom_call.1} parent=27 // pred_check_branch
          %235 = sbr.rel (%p233) target = $region36
        $region35: #{tpu_custom_call.1} parent=27 // pred_region
          %236 = dma.done [#allocation6], 512
        $region36: #{tpu_custom_call.1} parent=27 // pred_fallthru
          _
        %s237 = sand.u32 %s48, 1
        %s238 = scalar_lea.sflag [#allocation3], %s237
        %s239 = sand.u32 %s48, 1
        %s240 = smul.addr %s239, 8
        %s241 = scalar_lea.vmem [#allocation2], %s240
        %p242 = pneg %p61
        %p243 = pneg %p58
        %p244 = pneg %p82
        %p245 = pneg %p79
        %p246 = pneg %p110
        %p247 = pneg %p107
        %s248 = sand.u32 %s97, 1
        %s249 = scalar_lea.sflag [#allocation4], %s248
        %s250 = sand.u32 %s97, 1
        %s251 = smul.addr %s250, 32
        %s252 = scalar_lea.vmem [#allocation7], %s251
        %p253 = pneg %p138
        %p254 = pneg %p135
        %s255 = sand.u32 %s26, 1
        %s256 = scalar_lea.sflag [#allocation9], %s255
        %s257 = sand.u32 %s125, 1
        %s258 = smul.addr %s257, 32
        %s259 = scalar_lea.vmem [#allocation8], %s258
        %p260 = pneg %p166
        %p261 = pneg %p163
        %s262 = sand.u32 %s26, 1
        %s263 = scalar_lea.sflag [#allocation9], %s262
        %s264 = sand.u32 %s153, 1
        %s265 = smul.addr %s264, 32
        %s266 = scalar_lea.vmem [#allocation10], %s265
        %v267 = vld [vmem:[%s228] sm:$0xff]
        %v268 = vld [vmem:[#allocation5] sm:$0xff]
        %v269 = vld [vmem:[#allocation5 + $0x8] sm:$0xff]
        %v270 = vld [vmem:[#allocation5 + $0x10] sm:$0xff]
        %v271 = vld [vmem:[#allocation5 + $0x18] sm:$0xff]
        %vm272 = vcmask 261120
        %v274 = vsel %vm272, %v267, 0
        %276 = vmatprep.subr.mxu0 0.0
        %277 = vmatpush1.msra.mxu0 %v268
        %278 = vmatprep.subr.mxu0 0.0
        %279 = vmatpush1.msra.mxu0 %v269
        %280 = vmatprep.subr.mxu0 0.0
        %281 = vmatpush1.msra.mxu0 %v270
        %282 = vmatprep.subr.mxu0 0.0
        %283 = vmatpush1.msra.mxu0 %v271
        %284 = vmatprep.subr.mxu0 0.0
        %285 = vmatpush1.msra.mxu0 0.0
        %286 = vmatprep.subr.mxu0 0.0
        %287 = vmatpush1.msra.mxu0 0.0
        %288 = vmatprep.subr.mxu0 0.0
        %289 = vmatpush1.msra.mxu0 0.0
        %290 = vmatprep.subr.mxu0 0.0
        %291 = vmatpush1.msra.mxu0 0.0
        %292 = vmatprep.subr.mxu0 0.0
        %293 = vmatpush1.msra.mxu0 0.0
        %294 = vmatprep.subr.mxu0 0.0
        %295 = vmatpush1.msra.mxu0 0.0
        %296 = vmatprep.subr.mxu0 0.0
        %297 = vmatpush1.msra.mxu0 0.0
        %298 = vmatprep.subr.mxu0 0.0
        %299 = vmatpush1.msra.mxu0 0.0
        %300 = vmatprep.subr.mxu0 0.0
        %301 = vmatpush1.msra.mxu0 0.0
        %302 = vmatprep.subr.mxu0 0.0
        %303 = vmatpush1.msra.mxu0 0.0
        %304 = vmatprep.subr.mxu0 0.0
        %305 = vmatpush1.msra.mxu0 0.0
        %306 = vmatprep.subr.mxu0 0.0
        %307 = vmatpush1.msra.mxu0 0.0
        %308 = vmatprep.subr.mxu0 0.0
        %309 = vmatpush1.msra.mxu0 0.0
        %310 = vmatprep.subr.mxu0 0.0
        %311 = vmatpush1.msra.mxu0 0.0
        %312 = vmatprep.subr.mxu0 0.0
        %313 = vmatpush1.msra.mxu0 0.0
        %314 = vmatprep.subr.mxu0 0.0
        %315 = vmatpush1.msra.mxu0 0.0
        %316 = vmatprep.subr.mxu0 0.0
        %317 = vmatpush1.msra.mxu0 0.0
        %318 = vmatprep.subr.mxu0 0.0
        %319 = vmatpush1.msra.mxu0 0.0
        %320 = vmatprep.subr.mxu0 0.0
        %321 = vmatpush1.msra.mxu0 0.0
        %322 = vmatprep.subr.mxu0 0.0
        %323 = vmatpush1.msra.mxu0 0.0
        %324 = vmatprep.subr.mxu0 0.0
        %325 = vmatpush1.msra.mxu0 0.0
        %326 = vmatprep.subr.mxu0 0.0
        %327 = vmatpush1.msra.mxu0 0.0
        %328 = vmatprep.subr.mxu0 0.0
        %329 = vmatpush1.msra.mxu0 0.0
        %330 = vmatprep.subr.mxu0 0.0
        %331 = vmatpush1.msra.mxu0 0.0
        %332 = vmatprep.subr.mxu0 0.0
        %333 = vmatpush1.msra.mxu0 0.0
        %334 = vmatprep.subr.mxu0 0.0
        %335 = vmatpush1.msra.mxu0 0.0
        %336 = vmatprep.subr.mxu0 0.0
        %337 = vmatpush1.msra.mxu0 0.0
        %338 = vmatprep.subr.mxu0 0.0
        %339 = vmatpush1.msra.mxu0 0.0
        %340 = vmatprep.mubr.f32.mxu0 0.0
        %341 = vmatmul.mubr.f32.gmra.mrb[0].mxu0 %v274
        %v342 = vpop.f32.mrb[0].mxu0
        %v343 = vadd.f32 0.0, %v342
        %v344 = vpop.f32.mrb[0].mxu0
        %345 = vdwg.mxu0
        %v346 = vmul.f32 %v343, 0.5100697
        %vm347 = vcmask 64512
        %348 = vst.msk [vmem:[%s252] sm:$0xff] %vm347, %v346
        %350 = vrot.lane.b32.xlu0 %v343, 96
        %v351 = vpop.permute.xlu0 %350
        %353 = vst.msk [vmem:[%s259] sm:$0xff] %vm347, %v351
        %354 = vrot.lane.b32.xlu0 %v343, 64
        %v355 = vpop.permute.xlu0 %354
        %357 = vst.msk [vmem:[%s266] sm:$0xff] %vm347, %v355
        %359 = vrot.lane.b32.xlu0 %v346, 120
        %v360 = vpop.permute.xlu0 %359
        %s362 = scalar_lea.vmem %s252, 8 [#allocation7]
        %363 = vst.msk [vmem:[%s362] sm:$0xff] %vm347, %v360
        %364 = vrot.lane.b32.xlu0 %v343, 88
        %v365 = vpop.permute.xlu0 %364
        %s367 = scalar_lea.vmem %s259, 8 [#allocation8]
        %368 = vst.msk [vmem:[%s367] sm:$0xff] %vm347, %v365
        %369 = vrot.lane.b32.xlu0 %v343, 56
        %v370 = vpop.permute.xlu0 %369
        %s372 = scalar_lea.vmem %s266, 8 [#allocation10]
        %373 = vst.msk [vmem:[%s372] sm:$0xff] %vm347, %v370
        %374 = vrot.lane.b32.xlu0 %v346, 112
        %v375 = vpop.permute.xlu0 %374
        %s377 = scalar_lea.vmem %s252, 16 [#allocation7]
        %378 = vst.msk [vmem:[%s377] sm:$0xff] %vm347, %v375
        %379 = vrot.lane.b32.xlu0 %v343, 80
        %v380 = vpop.permute.xlu0 %379
        %s382 = scalar_lea.vmem %s259, 16 [#allocation8]
        %383 = vst.msk [vmem:[%s382] sm:$0xff] %vm347, %v380
        %384 = vrot.lane.b32.xlu0 %v343, 48
        %v385 = vpop.permute.xlu0 %384
        %s387 = scalar_lea.vmem %s266, 16 [#allocation10]
        %388 = vst.msk [vmem:[%s387] sm:$0xff] %vm347, %v385
        %389 = vrot.lane.b32.xlu0 %v346, 104
        %v390 = vpop.permute.xlu0 %389
        %s392 = scalar_lea.vmem %s252, 24 [#allocation7]
        %393 = vst.msk [vmem:[%s392] sm:$0xff] %vm347, %v390
        %394 = vrot.lane.b32.xlu0 %v343, 72
        %v395 = vpop.permute.xlu0 %394
        %s397 = scalar_lea.vmem %s259, 24 [#allocation8]
        %398 = vst.msk [vmem:[%s397] sm:$0xff] %vm347, %v395
        %399 = vrot.lane.b32.xlu0 %v343, 40
        %v400 = vpop.permute.xlu0 %399
        %s402 = scalar_lea.vmem %s266, 24 [#allocation10]
        %403 = vst.msk [vmem:[%s402] sm:$0xff] %vm347, %v400
        %s404 = sand.u32 %s97, 1
        %s405 = scalar_lea.sflag [#allocation4], %s404
        %s406 = sand.u32 %s97, 1
        %s407 = smul.addr %s406, 32
        %s408 = scalar_lea.vmem [#allocation7], %s407
        %s409 = sand.u32 %s26, 1
        %s410 = scalar_lea.sflag [#allocation9], %s409
        %s411 = sand.u32 %s125, 1
        %s412 = smul.addr %s411, 32
        %s413 = scalar_lea.vmem [#allocation8], %s412
        %s414 = sand.u32 %s26, 1
        %s415 = scalar_lea.sflag [#allocation9], %s414
        %s416 = sand.u32 %s153, 1
        %s417 = smul.addr %s416, 32
        %s418 = scalar_lea.vmem [#allocation10], %s417
        // Predicated region
        $region37: #{tpu_custom_call.1} parent=27 // pred_check
          %p419 = pneg %p107
        $region38: #{tpu_custom_call.1} parent=27 // pred_check_branch
          %421 = sbr.rel (%p419) target = $region40
        $region39: #{tpu_custom_call.1} parent=27 // pred_region
          %s423 = ssub.s32 512, 512
          %424 = vsyncadd %s405, %s423
          %s425 = smul.addr %s30, 4
          %s426 = sadd.s32 %s31, %s425
          %s427 = smul.addr %s426, 128
          %s428 = scalar_lea.hbm %s2, %s427
          %s429 = sshll.u32 %s408, 4
          %s430 = int_to_ptr.vmem [resolvable:$true] %s429
          %435 = dma.vmem_to_hbm [thread:$0]  %s430, 512, %s428, %s405, 128, 128, 8
        $region40: #{tpu_custom_call.1} parent=27 // pred_fallthru
          _
        // Predicated region
        $region41: #{tpu_custom_call.1} parent=27 // pred_check
          %p436 = pneg %p135
        $region42: #{tpu_custom_call.1} parent=27 // pred_check_branch
          %438 = sbr.rel (%p436) target = $region44
        $region43: #{tpu_custom_call.1} parent=27 // pred_region
          %s440 = ssub.s32 512, 512
          %441 = vsyncadd %s410, %s440
          %s442 = smul.addr %s30, 4
          %s443 = sadd.s32 %s31, %s442
          %s444 = smul.addr %s443, 128
          %s445 = scalar_lea.hbm %s3, %s444
          %s446 = sshll.u32 %s413, 4
          %s447 = int_to_ptr.vmem [resolvable:$true] %s446
          %452 = dma.vmem_to_hbm [thread:$0]  %s447, 512, %s445, %s410, 128, 128, 8
        $region44: #{tpu_custom_call.1} parent=27 // pred_fallthru
          _
        // Predicated region
        $region45: #{tpu_custom_call.1} parent=27 // pred_check
          %p453 = pneg %p163
        $region46: #{tpu_custom_call.1} parent=27 // pred_check_branch
          %455 = sbr.rel (%p453) target = $region48
        $region47: #{tpu_custom_call.1} parent=27 // pred_region
          %s457 = ssub.s32 512, 512
          %458 = vsyncadd %s415, %s457
          %s459 = smul.addr %s30, 4
          %s460 = sadd.s32 %s31, %s459
          %s461 = smul.addr %s460, 128
          %s462 = scalar_lea.hbm %s4, %s461
          %s463 = sshll.u32 %s418, 4
          %s464 = int_to_ptr.vmem [resolvable:$true] %s463
          %469 = dma.vmem_to_hbm [thread:$0]  %s464, 512, %s462, %s415, 128, 128, 8
        $region48: #{tpu_custom_call.1} parent=27 // pred_fallthru
          _
      $region28: #{tpu_custom_call.1} parent=5 // pred_fallthru
        _
      %p470 = scmp.le.s32.totalorder 2, %s21
      // Predicated region
      $region49: #{tpu_custom_call.1} parent=5 // pred_check
        %p471 = pneg %p470
      $region50: #{tpu_custom_call.1} parent=5 // pred_check_branch
        %473 = sbr.rel (%p471) target = $region52
      $region51: #{tpu_custom_call.1} parent=5 // pred_region
        %s474 = ssub.s32 %s21, 2
        // Predicated region
        $region53: #{tpu_custom_call.1} parent=51 // pred_check
          %p475 = pneg %p113
        $region54: #{tpu_custom_call.1} parent=51 // pred_check_branch
          %477 = sbr.rel (%p475) target = $region56
        $region55: #{tpu_custom_call.1} parent=51 // pred_region
          %s478 = sand.u32 %s98, 1
          %s479 = scalar_lea.sflag [#allocation4], %s478
          %s480 = sand.u32 %s98, 1
          %s481 = smul.addr %s480, 32
          %s482 = scalar_lea.vmem [#allocation7], %s481
          %483 = dma.done %s479, 512
        $region56: #{tpu_custom_call.1} parent=51 // pred_fallthru
          _
        // Predicated region
        $region57: #{tpu_custom_call.1} parent=51 // pred_check
          %p484 = pneg %p141
        $region58: #{tpu_custom_call.1} parent=51 // pred_check_branch
          %486 = sbr.rel (%p484) target = $region60
        $region59: #{tpu_custom_call.1} parent=51 // pred_region
          %s487 = sand.u32 %s27, 1
          %s488 = scalar_lea.sflag [#allocation9], %s487
          %s489 = sand.u32 %s126, 1
          %s490 = smul.addr %s489, 32
          %s491 = scalar_lea.vmem [#allocation8], %s490
          %492 = dma.done %s488, 512
        $region60: #{tpu_custom_call.1} parent=51 // pred_fallthru
          _
        // Predicated region
        $region61: #{tpu_custom_call.1} parent=51 // pred_check
          %p493 = pneg %p169
        $region62: #{tpu_custom_call.1} parent=51 // pred_check_branch
          %495 = sbr.rel (%p493) target = $region64
        $region63: #{tpu_custom_call.1} parent=51 // pred_region
          %s496 = sand.u32 %s27, 1
          %s497 = scalar_lea.sflag [#allocation9], %s496
          %s498 = sand.u32 %s154, 1
          %s499 = smul.addr %s498, 32
          %s500 = scalar_lea.vmem [#allocation10], %s499
          %501 = dma.done %s497, 512
        $region64: #{tpu_custom_call.1} parent=51 // pred_fallthru
          _
      $region52: #{tpu_custom_call.1} parent=5 // pred_fallthru
        _
    $region6: #{tpu_custom_call.1} parent=1 // loop_footer
      %s25 = sadd.s32 1, %s21
    $region7: #{tpu_custom_call.1} parent=1 // loop_footer_branch
      %20 = sbr.rel target = $region3
    $region8: #{tpu_custom_call.1} parent=1 // loop_exit
      _
    %502 = vsyncpa [#allocation3], 1
    %s503 = scalar_lea.sflag [#allocation3], 1
    %504 = vsyncpa %s503, 1
    %505 = vsyncpa [#allocation6], 1
    %506 = vsyncpa [#allocation4], 1
    %s507 = scalar_lea.sflag [#allocation4], 1
    %508 = vsyncpa %s507, 1
    %509 = vsyncpa [#allocation9], 1
    %s510 = scalar_lea.sflag [#allocation9], 1
    %511 = vsyncpa %s510, 1

</llo_original>
